<compile_context>
chip_gen: v5e
topology: v5e:2x2
jax: 0.10.0
libtpu: 0.0.40
codegen_flags: <defaults>
</compile_context>

<pallas_src>
import functools
import numpy as np
import jax
import jax.numpy as jnp
from jax import lax
from jax.experimental import pallas as pl
from jax.experimental.pallas import tpu as pltpu


_VMEM_LIMIT_BYTES = 48 * 1024 * 1024     # explicit scoped-VMEM limit (fits v7x 64 MiB/TC)
_X_VMEM_BUDGET_BYTES = 32 * 1024 * 1024  # budget for the double-buffered x slab


def _batch_tile(batch):
    """MXU-friendly batch tile: TB = min(B, 128) with B % TB == 0.

    Small batches take one fat step (no megacore split of tiny M); large batches
    get multiple 'parallel' steps of 64-128 rows each.
    """
    if batch <= 128:
        return batch
    for tb in (128, 64, 32, 16, 8):
        if batch % tb == 0:
            return tb
    return batch  # odd batch: single full step


def _spatial_tile(spatial, tb, chan, itemsize=4):
    """Largest TS (S % TS == 0, TS % 8 == 0 or TS == S) whose double-buffered
    (TB, TS, C) x block fits the VMEM budget."""
    def fits(ts):
        return 2 * tb * ts * chan * itemsize <= _X_VMEM_BUDGET_BYTES
    if fits(spatial):
        return spatial
    ts = (spatial // 8) * 8
    while ts >= 8:
        if spatial % ts == 0 and fits(ts):
            return ts
        ts -= 8
    return spatial  # fallback: full S (correct, may be tight on VMEM)


def _mlp_head_kernel(x_ref, w1_ref, b1_ref, w2_ref, b2_ref, o_ref, pooled_acc,
                     *, inv_spatial):
    # x_ref : (TB, TS, C) channels-last spatial chunk (f32)
    # w1_ref: (C, C) bf16    b1_ref: (1, C) f32
    # w2_ref: (C, F) bf16    b2_ref: (1, F) f32
    # o_ref : (TB, F) f32 (L2-normalized projection)
    # pooled_acc: (TB, C) f32 scratch (spatial-sum accumulator)
    s = pl.program_id(1)

    @pl.when(s == 0)
    def _():
        pooled_acc[...] = jnp.zeros_like(pooled_acc)

    # Spatial pool: sublane reduce of the channels-last chunk; C stays on lanes.
    pooled_acc[...] += jnp.sum(x_ref[...], axis=1)

    @pl.when(s == pl.num_programs(1) - 1)
    def _():
        pooled = (pooled_acc[...] * inv_spatial).astype(w1_ref.dtype)   # mean, bf16 for MXU
        h = jnp.dot(pooled, w1_ref[...],
                    preferred_element_type=jnp.float32) + b1_ref[...]
        h = jnp.maximum(h, 0.0).astype(w2_ref.dtype)                    # ReLU
        z = jnp.dot(h, w2_ref[...],
                    preferred_element_type=jnp.float32) + b2_ref[...]
        # F.normalize(dim=1, eps=1e-12): z / max(||z||, 1e-12) == z * rsqrt(max(sumsq, 1e-24))
        inv_norm = lax.rsqrt(jnp.maximum(jnp.sum(z * z, axis=-1, keepdims=True), 1e-24))
        o_ref[...] = (z * inv_norm).astype(o_ref.dtype)


def _linear_head_kernel(x_ref, w_ref, b_ref, o_ref):
    # x_ref: (TB, C) f32   w_ref: (C, F) bf16   b_ref: (1, F) f32   o_ref: (TB, F) f32
    xb = x_ref[...].astype(w_ref.dtype)
    z = jnp.dot(xb, w_ref[...], preferred_element_type=jnp.float32) + b_ref[...]
    inv_norm = lax.rsqrt(jnp.maximum(jnp.sum(z * z, axis=-1, keepdims=True), 1e-24))
    o_ref[...] = (z * inv_norm).astype(o_ref.dtype)


def mlp_projection(x, w1, b1, w2, b2):
    """Fused pool + MLP + L2-normalize. x: (B, C, H, W) f32 -> (B, feat_dim)."""
    B, C, H, W = x.shape
    S = H * W
    feat = w2.shape[1]
    # Channels-last slab for lane-dense C-wide DMAs and MXU-ready pooled layout.
    # TODO(synk): have the upstream encoder emit NHWC so this transpose pass disappears.
    x3 = jnp.transpose(x, (0, 2, 3, 1)).reshape(B, S, C)
    TB = _batch_tile(B)
    TS = _spatial_tile(S, TB, C, x.dtype.itemsize)
    grid = (B // TB, S // TS)
    kern = functools.partial(_mlp_head_kernel, inv_spatial=1.0 / float(S))
    return pl.pallas_call(
        kern,
        out_shape=jax.ShapeDtypeStruct((B, feat), x.dtype),
        grid_spec=pltpu.PrefetchScalarGridSpec(
            num_scalar_prefetch=0,
            grid=grid,
            in_specs=[
                pl.BlockSpec((TB, TS, C), lambda i, s: (i, s, 0)),   # x chunk
                pl.BlockSpec((C, C), lambda i, s: (0, 0)),           # W1 (VMEM-resident)
                pl.BlockSpec((1, C), lambda i, s: (0, 0)),           # b1
                pl.BlockSpec((C, feat), lambda i, s: (0, 0)),        # W2
                pl.BlockSpec((1, feat), lambda i, s: (0, 0)),        # b2
            ],
            out_specs=pl.BlockSpec((TB, feat), lambda i, s: (i, 0)),  # lane-dense output
            scratch_shapes=[pltpu.VMEM((TB, C), jnp.float32)],        # pooled-sum accumulator
        ),
        compiler_params=pltpu.CompilerParams(
            dimension_semantics=("parallel", "arbitrary"),
            vmem_limit_bytes=_VMEM_LIMIT_BYTES),
    )(x3, w1, b1, w2, b2)


def linear_projection(x, w, b):
    """Linear head + L2-normalize. x: (B, dim_in) f32 -> (B, feat_dim)."""
    B, C = x.shape
    feat = w.shape[1]
    TB = _batch_tile(B)
    grid = (B // TB,)
    return pl.pallas_call(
        _linear_head_kernel,
        out_shape=jax.ShapeDtypeStruct((B, feat), x.dtype),
        grid_spec=pltpu.PrefetchScalarGridSpec(
            num_scalar_prefetch=0,
            grid=grid,
            in_specs=[
                pl.BlockSpec((TB, C), lambda i: (i, 0)),
                pl.BlockSpec((C, feat), lambda i: (0, 0)),
                pl.BlockSpec((1, feat), lambda i: (0, 0)),
            ],
            out_specs=pl.BlockSpec((TB, feat), lambda i: (i, 0)),
        ),
        compiler_params=pltpu.CompilerParams(
            dimension_semantics=("parallel",),
            vmem_limit_bytes=_VMEM_LIMIT_BYTES),
    )(x, w, b)


class EncoderProjectionPallas:
    """Pallas/JAX equivalent of the PyTorch EncoderProjection module.

    Weights are stored pre-transposed as (in, out) device arrays, built once in
    __init__. Matmul weights are kept in bfloat16 (half HBM/VMEM, 2x MXU rate);
    biases and all accumulation stay float32.
    """

    def __init__(self, head='mlp', dim_in=1024, feat_dim=128, *, key=None):
        if key is None:
            key = jax.random.PRNGKey(0)
        self.head = head
        self.dim_in = dim_in
        self.feat_dim = feat_dim
        bound = 1.0 / float(np.sqrt(dim_in))   # PyTorch Linear default init range
        if head == 'mlp':
            k1, k2, k3, k4 = jax.random.split(key, 4)
            self.w1 = jax.random.uniform(k1, (dim_in, dim_in), jnp.float32,
                                         -bound, bound).astype(jnp.bfloat16)
            self.b1 = jax.random.uniform(k2, (1, dim_in), jnp.float32, -bound, bound)
            self.w2 = jax.random.uniform(k3, (dim_in, feat_dim), jnp.float32,
                                         -bound, bound).astype(jnp.bfloat16)
            self.b2 = jax.random.uniform(k4, (1, feat_dim), jnp.float32, -bound, bound)
        elif head == 'linear':
            k1, k2 = jax.random.split(key, 2)
            self.w = jax.random.uniform(k1, (dim_in, feat_dim), jnp.float32,
                                        -bound, bound).astype(jnp.bfloat16)
            self.b = jax.random.uniform(k2, (1, feat_dim), jnp.float32, -bound, bound)
        else:
            raise NotImplementedError('head not supported: {}'.format(head))

    def __call__(self, x):
        if self.head == 'mlp':
            assert x.ndim == 4 and x.shape[1] == self.dim_in, x.shape
            return mlp_projection(x, self.w1, self.b1, self.w2, self.b2)
        else:  # 'linear'
            assert x.ndim == 2 and x.shape[1] == self.dim_in, x.shape
            return linear_projection(x, self.w, self.b)


# ----------------------- pure-numpy references -----------------------

def encoder_projection_mlp_ref(x, w1, b1, w2, b2):
    pooled = x.mean(axis=(2, 3))                             # AdaptiveAvgPool2d((1,1)) + Flatten
    h = np.maximum(pooled @ w1 + b1, 0.0)
    z = h @ w2 + b2
    n = np.sqrt((z * z).sum(axis=1, keepdims=True))
    return z / np.maximum(n, 1e-12)


def encoder_projection_linear_ref(x, w, b):
    z = x @ w + b
    n = np.sqrt((z * z).sum(axis=1, keepdims=True))
    return z / np.maximum(n, 1e-12)


def _f32(a):
    return np.asarray(jnp.asarray(a, dtype=jnp.float32))


if __name__ == "__main__":
    B, C, H, W = 16, 256, 8, 8          # dim_in = C = 256 (small-shape stand-in for 1024)
    feat_dim = 128
    key = jax.random.PRNGKey(0)
    kx, kp, kl, kxl = jax.random.split(key, 4)

    # --- 'mlp' head (module default) ---
    x = jax.random.normal(kx, (B, C, H, W), dtype=jnp.float32)
    mlp = EncoderProjectionPallas(head='mlp', dim_in=C, feat_dim=feat_dim, key=kp)
    out = jax.block_until_ready(mlp(x))
    ref = encoder_projection_mlp_ref(np.asarray(x), _f32(mlp.w1), _f32(mlp.b1),
                                     _f32(mlp.w2), _f32(mlp.b2))
    assert out.shape == ref.shape == (B, feat_dim), (out.shape, ref.shape)
    # bf16 activations at the dots -> slightly looser tolerance than pure f32
    np.testing.assert_allclose(np.asarray(out), ref, rtol=0, atol=2e-2)

    # --- 'linear' head ---
    x2 = jax.random.normal(kxl, (B, C), dtype=jnp.float32)
    lin = EncoderProjectionPallas(head='linear', dim_in=C, feat_dim=feat_dim, key=kl)
    out2 = jax.block_until_ready(lin(x2))
    ref2 = encoder_projection_linear_ref(np.asarray(x2), _f32(lin.w), _f32(lin.b))
    assert out2.shape == ref2.shape == (B, feat_dim), (out2.shape, ref2.shape)
    np.testing.assert_allclose(np.asarray(out2), ref2, rtol=0, atol=2e-2)

    print("KERNEL_OK")
</pallas_src>

<mosaic_0001>
module attributes {stable_mosaic.version = 11 : i64} {
  func.func @_mlp_head_kernel(%arg0: i32, %arg1: i32, %arg2: memref<16x64x256xf32, #tpu.memory_space<vmem>>, %arg3: memref<256x256xbf16, #tpu.memory_space<vmem>>, %arg4: memref<1x256xf32, #tpu.memory_space<vmem>>, %arg5: memref<256x128xbf16, #tpu.memory_space<vmem>>, %arg6: memref<1x128xf32, #tpu.memory_space<vmem>>, %arg7: memref<16x128xf32, #tpu.memory_space<vmem>>, %arg8: memref<16x256xf32, #tpu.memory_space<vmem>>) attributes {dimension_semantics = [#tpu.dimension_semantics<parallel>, #tpu.dimension_semantics<arbitrary>], iteration_bounds = array<i64: 1, 1>, scalar_prefetch = 0 : i64, scratch_operands = 1 : i64, tpu.core_type = #tpu.core_type<tc>, window_params = [{transform_indices = @transform_0, window_bounds = array<i64: 16, 64, 256>}, {pipeline_mode = #tpu.pipeline_mode<synchronous>, transform_indices = @transform_1, window_bounds = array<i64: 256, 256>}, {pipeline_mode = #tpu.pipeline_mode<synchronous>, transform_indices = @transform_2, window_bounds = array<i64: 1, 256>}, {pipeline_mode = #tpu.pipeline_mode<synchronous>, transform_indices = @transform_3, window_bounds = array<i64: 256, 128>}, {pipeline_mode = #tpu.pipeline_mode<synchronous>, transform_indices = @transform_4, window_bounds = array<i64: 1, 128>}, {transform_indices = @transform_5, window_bounds = array<i64: 16, 128>}]} {
    %c0_i32 = arith.constant 0 : i32
    %0 = arith.cmpi eq, %arg1, %c0_i32 : i32
    %1 = arith.extui %0 : i1 to i32
    %c0_i32_0 = arith.constant 0 : i32
    %2 = arith.cmpi ne, %1, %c0_i32_0 : i32
    scf.if %2 {
      %cst_9 = arith.constant 0.000000e+00 : f32
      %11 = vector.broadcast %cst_9 : f32 to vector<16x256xf32>
      %c0_10 = arith.constant 0 : index
      %c0_11 = arith.constant 0 : index
      %12 = vector.load %arg8[%c0_10, %c0_11] : memref<16x256xf32, #tpu.memory_space<vmem>>, vector<16x256xf32>
      tpu.vector_store %arg8[%c0_10, %c0_11], %11 {strides = array<i32>} : memref<16x256xf32, #tpu.memory_space<vmem>>, vector<16x256xf32>,
    } else {
    }
    %c0 = arith.constant 0 : index
    %c0_1 = arith.constant 0 : index
    %3 = vector.load %arg8[%c0, %c0_1] : memref<16x256xf32, #tpu.memory_space<vmem>>, vector<16x256xf32>
    %c0_2 = arith.constant 0 : index
    %c0_3 = arith.constant 0 : index
    %c0_4 = arith.constant 0 : index
    %4 = vector.load %arg2[%c0_2, %c0_3, %c0_4] : memref<16x64x256xf32, #tpu.memory_space<vmem>>, vector<16x64x256xf32>
    %cst = arith.constant dense<0.000000e+00> : vector<16x256xf32>
    %5 = vector.multi_reduction <add>, %4, %cst [1] : vector<16x64x256xf32> to vector<16x256xf32>
    %6 = arith.addf %3, %5 : vector<16x256xf32>
    %c0_5 = arith.constant 0 : index
    %c0_6 = arith.constant 0 : index
    %7 = vector.load %arg8[%c0_5, %c0_6] : memref<16x256xf32, #tpu.memory_space<vmem>>, vector<16x256xf32>
    tpu.vector_store %arg8[%c0_5, %c0_6], %6 {strides = array<i32>} : memref<16x256xf32, #tpu.memory_space<vmem>>, vector<16x256xf32>,
    %c0_i32_7 = arith.constant 0 : i32
    %8 = arith.cmpi eq, %arg1, %c0_i32_7 : i32
    %9 = arith.extui %8 : i1 to i32
    %c0_i32_8 = arith.constant 0 : i32
    %10 = arith.cmpi ne, %9, %c0_i32_8 : i32
    scf.if %10 {
      %c0_9 = arith.constant 0 : index
      %c0_10 = arith.constant 0 : index
      %11 = vector.load %arg8[%c0_9, %c0_10] : memref<16x256xf32, #tpu.memory_space<vmem>>, vector<16x256xf32>
      %cst_11 = arith.constant 1.562500e-02 : f32
      %12 = vector.broadcast %cst_11 : f32 to vector<16x256xf32>
      %13 = arith.mulf %11, %12 : vector<16x256xf32>
      %14 = arith.truncf %13 : vector<16x256xf32> to vector<16x256xbf16>
      %c0_12 = arith.constant 0 : index
      %c0_13 = arith.constant 0 : index
      %15 = vector.load %arg3[%c0_12, %c0_13] : memref<256x256xbf16, #tpu.memory_space<vmem>>, vector<256x256xbf16>
      %cst_14 = arith.constant dense<0.000000e+00> : vector<16x256xf32>
      %16 = tpu.matmul %14, %15, %cst_14 {dimension_numbers = #tpu.dot_dimension_numbers<[1], [0], [0], [1], [0, 0, 1, 1], [], []>} : vector<16x256xbf16>, vector<256x256xbf16>, vector<16x256xf32> -> vector<16x256xf32>
      %c0_15 = arith.constant 0 : index
      %c0_16 = arith.constant 0 : index
      %17 = vector.load %arg4[%c0_15, %c0_16] : memref<1x256xf32, #tpu.memory_space<vmem>>, vector<1x256xf32>
      %18 = vector.broadcast %17 : vector<1x256xf32> to vector<16x256xf32>
      %19 = arith.addf %16, %18 : vector<16x256xf32>
      %cst_17 = arith.constant 0.000000e+00 : f32
      %20 = vector.broadcast %cst_17 : f32 to vector<16x256xf32>
      %21 = arith.maximumf %19, %20 : vector<16x256xf32>
      %22 = arith.truncf %21 : vector<16x256xf32> to vector<16x256xbf16>
      %c0_18 = arith.constant 0 : index
      %c0_19 = arith.constant 0 : index
      %23 = vector.load %arg5[%c0_18, %c0_19] : memref<256x128xbf16, #tpu.memory_space<vmem>>, vector<256x128xbf16>
      %cst_20 = arith.constant dense<0.000000e+00> : vector<16x128xf32>
      %24 = tpu.matmul %22, %23, %cst_20 {dimension_numbers = #tpu.dot_dimension_numbers<[1], [0], [0], [1], [0, 0, 1, 1], [], []>} : vector<16x256xbf16>, vector<256x128xbf16>, vector<16x128xf32> -> vector<16x128xf32>
      %c0_21 = arith.constant 0 : index
      %c0_22 = arith.constant 0 : index
      %25 = vector.load %arg6[%c0_21, %c0_22] : memref<1x128xf32, #tpu.memory_space<vmem>>, vector<1x128xf32>
      %26 = vector.broadcast %25 : vector<1x128xf32> to vector<16x128xf32>
      %27 = arith.addf %24, %26 : vector<16x128xf32>
      %28 = arith.mulf %27, %27 : vector<16x128xf32>
      %cst_23 = arith.constant dense<0.000000e+00> : vector<16xf32>
      %29 = vector.multi_reduction <add>, %28, %cst_23 [1] : vector<16x128xf32> to vector<16xf32>
      %30 = vector.shape_cast %29 : vector<16xf32> to vector<16x1xf32>
      %cst_24 = arith.constant 1.000000e-24 : f32
      %31 = vector.broadcast %cst_24 : f32 to vector<16x1xf32>
      %32 = arith.maximumf %30, %31 : vector<16x1xf32>
      %33 = math.rsqrt %32 : vector<16x1xf32>
      %34 = vector.broadcast %33 : vector<16x1xf32> to vector<16x128xf32>
      %35 = arith.mulf %27, %34 : vector<16x128xf32>
      %c0_25 = arith.constant 0 : index
      %c0_26 = arith.constant 0 : index
      %36 = vector.load %arg7[%c0_25, %c0_26] : memref<16x128xf32, #tpu.memory_space<vmem>>, vector<16x128xf32>
      tpu.vector_store %arg7[%c0_25, %c0_26], %35 {strides = array<i32>} : memref<16x128xf32, #tpu.memory_space<vmem>>, vector<16x128xf32>,
    } else {
    }
    return
  }
  func.func @transform_0(%arg0: i32, %arg1: i32) -> (i32, i32, i32) {
    %c0_i32 = arith.constant 0 : i32
    %c0_i32_0 = arith.constant 0 : i32
    return %arg0, %arg1, %c0_i32 : i32, i32, i32
  }
  func.func @transform_1(%arg0: i32, %arg1: i32) -> (i32, i32) {
    %c0_i32 = arith.constant 0 : i32
    %c0_i32_0 = arith.constant 0 : i32
    %c0_i32_1 = arith.constant 0 : i32
    return %c0_i32, %c0_i32_0 : i32, i32
  }
  func.func @transform_2(%arg0: i32, %arg1: i32) -> (i32, i32) {
    %c0_i32 = arith.constant 0 : i32
    %c0_i32_0 = arith.constant 0 : i32
    %c0_i32_1 = arith.constant 0 : i32
    return %c0_i32, %c0_i32_0 : i32, i32
  }
  func.func @transform_3(%arg0: i32, %arg1: i32) -> (i32, i32) {
    %c0_i32 = arith.constant 0 : i32
    %c0_i32_0 = arith.constant 0 : i32
    %c0_i32_1 = arith.constant 0 : i32
    return %c0_i32, %c0_i32_0 : i32, i32
  }
  func.func @transform_4(%arg0: i32, %arg1: i32) -> (i32, i32) {
    %c0_i32 = arith.constant 0 : i32
    %c0_i32_0 = arith.constant 0 : i32
    %c0_i32_1 = arith.constant 0 : i32
    return %c0_i32, %c0_i32_0 : i32, i32
  }
  func.func @transform_5(%arg0: i32, %arg1: i32) -> (i32, i32) {
    %c0_i32 = arith.constant 0 : i32
    %c0_i32_0 = arith.constant 0 : i32
    return %arg0, %c0_i32 : i32, i32
  }
}

</mosaic_0001>

<llo_original>
// kernel: tpu_custom_call.1
$region0: #{tpu_custom_call.1}
  #allocation0 [shape = 'u32[]', space=smem, size = 0x4, offset = 0x4, fixed_abs, tag = 'smem constant byte address 0x4 - core index']
  #allocation1 [shape = 'u32[72,128]{1,0:T(1,128)}', space=vmem, size = 0x9000, scoped, tag = 'internal scratch']
  #allocation2 [shape = 'f32[16,256]{1,0:T(8,128)}', space=vmem, size = 0x4000, scoped, tag = 'scratch operand']
  %s0 = inlined_call_operand.hbm [shape: f32[16,64,256], index: 0, kind: input, shape index: {}]
  %s1 = inlined_call_operand.hbm [shape: bf16[256,256], index: 1, kind: input, shape index: {}]
  %s2 = inlined_call_operand.hbm [shape: f32[1,256], index: 2, kind: input, shape index: {}]
  %s3 = inlined_call_operand.hbm [shape: bf16[256,128], index: 3, kind: input, shape index: {}]
  %s4 = inlined_call_operand.vmem [shape: f32[1,128], index: 4, kind: input, shape index: {}]
  %s5 = inlined_call_operand.hbm [shape: f32[16,128], index: 5, kind: output, shape index: {}]
  %s6 = sld [smem:[#allocation0]]
  $region54: #{tpu_custom_call.1} parent=0
    _
  %s8 = ssub.s32 1, %s6
  %s9 = scalar_select 0, %s8, %s6
  $region1: #{tpu_custom_call.1} parent=0
    #allocation3 [shape = 'u8[1048576]{0}', space=vmem, size = 0x100000, scoped, tag = 'input window, operand 0, single buffered']
    #allocation4 [shape = 's32[1]{0}', space=sflag, size = 0x4, scoped, tag = 'scoped memory for tpu_custom_call.1']
    #allocation5 [shape = 's32[1]{0}', space=sflag, size = 0x4, scoped, tag = 'scoped memory for tpu_custom_call.1']
    #allocation6 [shape = 'u8[131072]{0}', space=vmem, size = 0x20000, scoped, tag = 'input window, operand 1, single buffered']
    #allocation7 [shape = 's32[1]{0}', space=sflag, size = 0x4, scoped, tag = 'scoped memory for tpu_custom_call.1']
    #allocation8 [shape = 'u8[1024]{0}', space=vmem, size = 0x400, scoped, tag = 'input window, operand 2, single buffered']
    #allocation9 [shape = 'u8[65536]{0}', space=vmem, size = 0x10000, scoped, tag = 'input window, operand 3, single buffered']
    #allocation10 [shape = 's32[1]{0}', space=sflag, size = 0x4, scoped, tag = 'scoped memory for tpu_custom_call.1']
    #allocation11 [shape = 'u8[8192]{0}', space=vmem, size = 0x2000, scoped, tag = 'output window, operand 0, single buffered']
    %10 = vsyncpa [#allocation4], 0
    %11 = vsyncpa [#allocation7], 0
    %12 = vsyncpa [#allocation10], 0
    %13 = vsyncpa [#allocation5], 0
    // Predicated region
    $region2: #{tpu_custom_call.1} parent=1 // pred_check
      _
    $region3: #{tpu_custom_call.1} parent=1 // pred_check_branch
      %15 = sbr.rel (0) target = $region5
    $region4: #{tpu_custom_call.1} parent=1 // pred_region
      %17 = vsyncadd [#allocation4], 0
      %s18 = sshll.u32 %s0, 4
      %s19 = int_to_ptr.hbm [resolvable:$true] %s18
      %s20 = sshll.u32 [#allocation3], 4
      %s21 = int_to_ptr.vmem [resolvable:$true] %s20
      %26 = dma.hbm_to_vmem [thread:$0]  %s19, 32768, %s21, [#allocation4], 256, 256, 16
    $region5: #{tpu_custom_call.1} parent=1 // pred_fallthru
      _
    // Predicated region
    $region6: #{tpu_custom_call.1} parent=1 // pred_check
      _
    $region7: #{tpu_custom_call.1} parent=1 // pred_check_branch
      %28 = sbr.rel (0) target = $region9
    $region8: #{tpu_custom_call.1} parent=1 // pred_region
      %30 = vsyncadd [#allocation7], 0
      %s31 = sshll.u32 %s1, 4
      %s32 = int_to_ptr.hbm [resolvable:$true] %s31
      %s33 = sshll.u32 [#allocation6], 4
      %s34 = int_to_ptr.vmem [resolvable:$true] %s33
      %39 = dma.hbm_to_vmem [thread:$0]  %s32, 4096, %s34, [#allocation7], 128, 128, 8
    $region9: #{tpu_custom_call.1} parent=1 // pred_fallthru
      _
    // Predicated region
    $region10: #{tpu_custom_call.1} parent=1 // pred_check
      _
    $region11: #{tpu_custom_call.1} parent=1 // pred_check_branch
      %41 = sbr.rel (0) target = $region13
    $region12: #{tpu_custom_call.1} parent=1 // pred_region
      %43 = vsyncadd [#allocation7], 0
      %s45 = sshll.u32 %s2, 4
      %s46 = int_to_ptr.hbm [resolvable:$true] %s45
      %s47 = sshll.u32 [#allocation8], 4
      %s48 = int_to_ptr.vmem [resolvable:$true] %s47
      %50 = dma.hbm_to_vmem [thread:$0]  %s46, 32, %s48, [#allocation7]
    $region13: #{tpu_custom_call.1} parent=1 // pred_fallthru
      _
    // Predicated region
    $region14: #{tpu_custom_call.1} parent=1 // pred_check
      _
    $region15: #{tpu_custom_call.1} parent=1 // pred_check_branch
      %52 = sbr.rel (0) target = $region17
    $region16: #{tpu_custom_call.1} parent=1 // pred_region
      %54 = vsyncadd [#allocation10], 0
      %s55 = sshll.u32 %s3, 4
      %s56 = int_to_ptr.hbm [resolvable:$true] %s55
      %s57 = sshll.u32 [#allocation9], 4
      %s58 = int_to_ptr.vmem [resolvable:$true] %s57
      %63 = dma.hbm_to_vmem [thread:$0]  %s56, 2048, %s58, [#allocation10], 64, 64, 4
    $region17: #{tpu_custom_call.1} parent=1 // pred_fallthru
      _
    // Predicated region
    $region18: #{tpu_custom_call.1} parent=1 // pred_check
      _
    $region19: #{tpu_custom_call.1} parent=1 // pred_check_branch
      %65 = sbr.rel (0) target = $region21
    $region20: #{tpu_custom_call.1} parent=1 // pred_region
      _
    $region21: #{tpu_custom_call.1} parent=1 // pred_fallthru
      _
    // Predicated region
    $region22: #{tpu_custom_call.1} parent=1 // pred_check
      _
    $region23: #{tpu_custom_call.1} parent=1 // pred_check_branch
      %67 = sbr.rel (0) target = $region25
    $region24: #{tpu_custom_call.1} parent=1 // pred_region
      %69 = dma.done [#allocation4], 32768
    $region25: #{tpu_custom_call.1} parent=1 // pred_fallthru
      _
    // Predicated region
    $region26: #{tpu_custom_call.1} parent=1 // pred_check
      _
    $region27: #{tpu_custom_call.1} parent=1 // pred_check_branch
      %71 = sbr.rel (0) target = $region29
    $region28: #{tpu_custom_call.1} parent=1 // pred_region
      %73 = dma.done [#allocation7], 4096
    $region29: #{tpu_custom_call.1} parent=1 // pred_fallthru
      _
    // Predicated region
    $region30: #{tpu_custom_call.1} parent=1 // pred_check
      _
    $region31: #{tpu_custom_call.1} parent=1 // pred_check_branch
      %75 = sbr.rel (0) target = $region33
    $region32: #{tpu_custom_call.1} parent=1 // pred_region
      %77 = dma.done [#allocation7], 32
    $region33: #{tpu_custom_call.1} parent=1 // pred_fallthru
      _
    // Predicated region
    $region34: #{tpu_custom_call.1} parent=1 // pred_check
      _
    $region35: #{tpu_custom_call.1} parent=1 // pred_check_branch
      %79 = sbr.rel (0) target = $region37
    $region36: #{tpu_custom_call.1} parent=1 // pred_region
      %81 = dma.done [#allocation10], 2048
    $region37: #{tpu_custom_call.1} parent=1 // pred_fallthru
      _
    %p82 = scmp.eq.s32.totalorder 0, 0
    // Predicated region
    $region38: #{tpu_custom_call.1} parent=1 // pred_check
      %p83 = pneg %p82
    $region39: #{tpu_custom_call.1} parent=1 // pred_check_branch
      %85 = sbr.rel (%p83) target = $region41
    $region40: #{tpu_custom_call.1} parent=1 // pred_region
      %86 = vst [vmem:[#allocation2] sm:$0xff] 0.0
      %87 = vst [vmem:[#allocation2 + $0x8] sm:$0xff] 0.0
      %88 = vst [vmem:[#allocation2 + $0x10] sm:$0xff] 0.0
      %89 = vst [vmem:[#allocation2 + $0x18] sm:$0xff] 0.0
    $region41: #{tpu_custom_call.1} parent=1 // pred_fallthru
      _
    %v90 = vld [vmem:[#allocation2] sm:$0xff]
    %v91 = vld [vmem:[#allocation2 + $0x8] sm:$0xff]
    %v92 = vld [vmem:[#allocation2 + $0x10] sm:$0xff]
    %v93 = vld [vmem:[#allocation2 + $0x18] sm:$0xff]
    %v94 = vld [vmem:[#allocation3] sm:$0xff]
    %v95 = vld [vmem:[#allocation3 + $0x8] sm:$0xff]
    %v96 = vld [vmem:[#allocation3 + $0x10] sm:$0xff]
    %v97 = vld [vmem:[#allocation3 + $0x18] sm:$0xff]
    %v98 = vld [vmem:[#allocation3 + $0x20] sm:$0xff]
    %v99 = vld [vmem:[#allocation3 + $0x28] sm:$0xff]
    %v100 = vld [vmem:[#allocation3 + $0x30] sm:$0xff]
    %v101 = vld [vmem:[#allocation3 + $0x38] sm:$0xff]
    %v102 = vld [vmem:[#allocation3 + $0x40] sm:$0xff]
    %v103 = vld [vmem:[#allocation3 + $0x48] sm:$0xff]
    %v104 = vld [vmem:[#allocation3 + $0x50] sm:$0xff]
    %v105 = vld [vmem:[#allocation3 + $0x58] sm:$0xff]
    %v106 = vld [vmem:[#allocation3 + $0x60] sm:$0xff]
    %v107 = vld [vmem:[#allocation3 + $0x68] sm:$0xff]
    %v108 = vld [vmem:[#allocation3 + $0x70] sm:$0xff]
    %v109 = vld [vmem:[#allocation3 + $0x78] sm:$0xff]
    %v110 = vld [vmem:[#allocation3 + $0x80] sm:$0xff]
    %v111 = vld [vmem:[#allocation3 + $0x88] sm:$0xff]
    %v112 = vld [vmem:[#allocation3 + $0x90] sm:$0xff]
    %v113 = vld [vmem:[#allocation3 + $0x98] sm:$0xff]
    %v114 = vld [vmem:[#allocation3 + $0xa0] sm:$0xff]
    %v115 = vld [vmem:[#allocation3 + $0xa8] sm:$0xff]
    %v116 = vld [vmem:[#allocation3 + $0xb0] sm:$0xff]
    %v117 = vld [vmem:[#allocation3 + $0xb8] sm:$0xff]
    %v118 = vld [vmem:[#allocation3 + $0xc0] sm:$0xff]
    %v119 = vld [vmem:[#allocation3 + $0xc8] sm:$0xff]
    %v120 = vld [vmem:[#allocation3 + $0xd0] sm:$0xff]
    %v121 = vld [vmem:[#allocation3 + $0xd8] sm:$0xff]
    %v122 = vld [vmem:[#allocation3 + $0xe0] sm:$0xff]
    %v123 = vld [vmem:[#allocation3 + $0xe8] sm:$0xff]
    %v124 = vld [vmem:[#allocation3 + $0xf0] sm:$0xff]
    %v125 = vld [vmem:[#allocation3 + $0xf8] sm:$0xff]
    %v126 = vld [vmem:[#allocation3 + $0x100] sm:$0xff]
    %v127 = vld [vmem:[#allocation3 + $0x108] sm:$0xff]
    %v128 = vld [vmem:[#allocation3 + $0x110] sm:$0xff]
    %v129 = vld [vmem:[#allocation3 + $0x118] sm:$0xff]
    %v130 = vld [vmem:[#allocation3 + $0x120] sm:$0xff]
    %v131 = vld [vmem:[#allocation3 + $0x128] sm:$0xff]
    %v132 = vld [vmem:[#allocation3 + $0x130] sm:$0xff]
    %v133 = vld [vmem:[#allocation3 + $0x138] sm:$0xff]
    %v134 = vld [vmem:[#allocation3 + $0x140] sm:$0xff]
    %v135 = vld [vmem:[#allocation3 + $0x148] sm:$0xff]
    %v136 = vld [vmem:[#allocation3 + $0x150] sm:$0xff]
    %v137 = vld [vmem:[#allocation3 + $0x158] sm:$0xff]
    %v138 = vld [vmem:[#allocation3 + $0x160] sm:$0xff]
    %v139 = vld [vmem:[#allocation3 + $0x168] sm:$0xff]
    %v140 = vld [vmem:[#allocation3 + $0x170] sm:$0xff]
    %v141 = vld [vmem:[#allocation3 + $0x178] sm:$0xff]
    %v142 = vld [vmem:[#allocation3 + $0x180] sm:$0xff]
    %v143 = vld [vmem:[#allocation3 + $0x188] sm:$0xff]
    %v144 = vld [vmem:[#allocation3 + $0x190] sm:$0xff]
    %v145 = vld [vmem:[#allocation3 + $0x198] sm:$0xff]
    %v146 = vld [vmem:[#allocation3 + $0x1a0] sm:$0xff]
    %v147 = vld [vmem:[#allocation3 + $0x1a8] sm:$0xff]
    %v148 = vld [vmem:[#allocation3 + $0x1b0] sm:$0xff]
    %v149 = vld [vmem:[#allocation3 + $0x1b8] sm:$0xff]
    %v150 = vld [vmem:[#allocation3 + $0x1c0] sm:$0xff]
    %v151 = vld [vmem:[#allocation3 + $0x1c8] sm:$0xff]
    %v152 = vld [vmem:[#allocation3 + $0x1d0] sm:$0xff]
    %v153 = vld [vmem:[#allocation3 + $0x1d8] sm:$0xff]
    %v154 = vld [vmem:[#allocation3 + $0x1e0] sm:$0xff]
    %v155 = vld [vmem:[#allocation3 + $0x1e8] sm:$0xff]
    %v156 = vld [vmem:[#allocation3 + $0x1f0] sm:$0xff]
    %v157 = vld [vmem:[#allocation3 + $0x1f8] sm:$0xff]
    %v158 = vld [vmem:[#allocation3 + $0x200] sm:$0xff]
    %v159 = vld [vmem:[#allocation3 + $0x208] sm:$0xff]
    %v160 = vld [vmem:[#allocation3 + $0x210] sm:$0xff]
    %v161 = vld [vmem:[#allocation3 + $0x218] sm:$0xff]
    %v162 = vld [vmem:[#allocation3 + $0x220] sm:$0xff]
    %v163 = vld [vmem:[#allocation3 + $0x228] sm:$0xff]
    %v164 = vld [vmem:[#allocation3 + $0x230] sm:$0xff]
    %v165 = vld [vmem:[#allocation3 + $0x238] sm:$0xff]
    %v166 = vld [vmem:[#allocation3 + $0x240] sm:$0xff]
    %v167 = vld [vmem:[#allocation3 + $0x248] sm:$0xff]
    %v168 = vld [vmem:[#allocation3 + $0x250] sm:$0xff]
    %v169 = vld [vmem:[#allocation3 + $0x258] sm:$0xff]
    %v170 = vld [vmem:[#allocation3 + $0x260] sm:$0xff]
    %v171 = vld [vmem:[#allocation3 + $0x268] sm:$0xff]
    %v172 = vld [vmem:[#allocation3 + $0x270] sm:$0xff]
    %v173 = vld [vmem:[#allocation3 + $0x278] sm:$0xff]
    %v174 = vld [vmem:[#allocation3 + $0x280] sm:$0xff]
    %v175 = vld [vmem:[#allocation3 + $0x288] sm:$0xff]
    %v176 = vld [vmem:[#allocation3 + $0x290] sm:$0xff]
    %v177 = vld [vmem:[#allocation3 + $0x298] sm:$0xff]
    %v178 = vld [vmem:[#allocation3 + $0x2a0] sm:$0xff]
    %v179 = vld [vmem:[#allocation3 + $0x2a8] sm:$0xff]
    %v180 = vld [vmem:[#allocation3 + $0x2b0] sm:$0xff]
    %v181 = vld [vmem:[#allocation3 + $0x2b8] sm:$0xff]
    %v182 = vld [vmem:[#allocation3 + $0x2c0] sm:$0xff]
    %v183 = vld [vmem:[#allocation3 + $0x2c8] sm:$0xff]
    %v184 = vld [vmem:[#allocation3 + $0x2d0] sm:$0xff]
    %v185 = vld [vmem:[#allocation3 + $0x2d8] sm:$0xff]
    %v186 = vld [vmem:[#allocation3 + $0x2e0] sm:$0xff]
    %v187 = vld [vmem:[#allocation3 + $0x2e8] sm:$0xff]
    %v188 = vld [vmem:[#allocation3 + $0x2f0] sm:$0xff]
    %v189 = vld [vmem:[#allocation3 + $0x2f8] sm:$0xff]
    %v190 = vld [vmem:[#allocation3 + $0x300] sm:$0xff]
    %v191 = vld [vmem:[#allocation3 + $0x308] sm:$0xff]
    %v192 = vld [vmem:[#allocation3 + $0x310] sm:$0xff]
    %v193 = vld [vmem:[#allocation3 + $0x318] sm:$0xff]
    %v194 = vld [vmem:[#allocation3 + $0x320] sm:$0xff]
    %v195 = vld [vmem:[#allocation3 + $0x328] sm:$0xff]
    %v196 = vld [vmem:[#allocation3 + $0x330] sm:$0xff]
    %v197 = vld [vmem:[#allocation3 + $0x338] sm:$0xff]
    %v198 = vld [vmem:[#allocation3 + $0x340] sm:$0xff]
    %v199 = vld [vmem:[#allocation3 + $0x348] sm:$0xff]
    %v200 = vld [vmem:[#allocation3 + $0x350] sm:$0xff]
    %v201 = vld [vmem:[#allocation3 + $0x358] sm:$0xff]
    %v202 = vld [vmem:[#allocation3 + $0x360] sm:$0xff]
    %v203 = vld [vmem:[#allocation3 + $0x368] sm:$0xff]
    %v204 = vld [vmem:[#allocation3 + $0x370] sm:$0xff]
    %v205 = vld [vmem:[#allocation3 + $0x378] sm:$0xff]
    %v206 = vld [vmem:[#allocation3 + $0x380] sm:$0xff]
    %v207 = vld [vmem:[#allocation3 + $0x388] sm:$0xff]
    %v208 = vld [vmem:[#allocation3 + $0x390] sm:$0xff]
    %v209 = vld [vmem:[#allocation3 + $0x398] sm:$0xff]
    %v210 = vld [vmem:[#allocation3 + $0x3a0] sm:$0xff]
    %v211 = vld [vmem:[#allocation3 + $0x3a8] sm:$0xff]
    %v212 = vld [vmem:[#allocation3 + $0x3b0] sm:$0xff]
    %v213 = vld [vmem:[#allocation3 + $0x3b8] sm:$0xff]
    %v214 = vld [vmem:[#allocation3 + $0x3c0] sm:$0xff]
    %v215 = vld [vmem:[#allocation3 + $0x3c8] sm:$0xff]
    %v216 = vld [vmem:[#allocation3 + $0x3d0] sm:$0xff]
    %v217 = vld [vmem:[#allocation3 + $0x3d8] sm:$0xff]
    %v218 = vld [vmem:[#allocation3 + $0x3e0] sm:$0xff]
    %v219 = vld [vmem:[#allocation3 + $0x3e8] sm:$0xff]
    %v220 = vld [vmem:[#allocation3 + $0x3f0] sm:$0xff]
    %v221 = vld [vmem:[#allocation3 + $0x3f8] sm:$0xff]
    %v222 = vld [vmem:[#allocation3 + $0x400] sm:$0xff]
    %v223 = vld [vmem:[#allocation3 + $0x408] sm:$0xff]
    %v224 = vld [vmem:[#allocation3 + $0x410] sm:$0xff]
    %v225 = vld [vmem:[#allocation3 + $0x418] sm:$0xff]
    %v226 = vld [vmem:[#allocation3 + $0x420] sm:$0xff]
    %v227 = vld [vmem:[#allocation3 + $0x428] sm:$0xff]
    %v228 = vld [vmem:[#allocation3 + $0x430] sm:$0xff]
    %v229 = vld [vmem:[#allocation3 + $0x438] sm:$0xff]
    %v230 = vld [vmem:[#allocation3 + $0x440] sm:$0xff]
    %v231 = vld [vmem:[#allocation3 + $0x448] sm:$0xff]
    %v232 = vld [vmem:[#allocation3 + $0x450] sm:$0xff]
    %v233 = vld [vmem:[#allocation3 + $0x458] sm:$0xff]
    %v234 = vld [vmem:[#allocation3 + $0x460] sm:$0xff]
    %v235 = vld [vmem:[#allocation3 + $0x468] sm:$0xff]
    %v236 = vld [vmem:[#allocation3 + $0x470] sm:$0xff]
    %v237 = vld [vmem:[#allocation3 + $0x478] sm:$0xff]
    %v238 = vld [vmem:[#allocation3 + $0x480] sm:$0xff]
    %v239 = vld [vmem:[#allocation3 + $0x488] sm:$0xff]
    %v240 = vld [vmem:[#allocation3 + $0x490] sm:$0xff]
    %v241 = vld [vmem:[#allocation3 + $0x498] sm:$0xff]
    %v242 = vld [vmem:[#allocation3 + $0x4a0] sm:$0xff]
    %v243 = vld [vmem:[#allocation3 + $0x4a8] sm:$0xff]
    %v244 = vld [vmem:[#allocation3 + $0x4b0] sm:$0xff]
    %v245 = vld [vmem:[#allocation3 + $0x4b8] sm:$0xff]
    %v246 = vld [vmem:[#allocation3 + $0x4c0] sm:$0xff]
    %v247 = vld [vmem:[#allocation3 + $0x4c8] sm:$0xff]
    %v248 = vld [vmem:[#allocation3 + $0x4d0] sm:$0xff]
    %v249 = vld [vmem:[#allocation3 + $0x4d8] sm:$0xff]
    %v250 = vld [vmem:[#allocation3 + $0x4e0] sm:$0xff]
    %v251 = vld [vmem:[#allocation3 + $0x4e8] sm:$0xff]
    %v252 = vld [vmem:[#allocation3 + $0x4f0] sm:$0xff]
    %v253 = vld [vmem:[#allocation3 + $0x4f8] sm:$0xff]
    %v254 = vld [vmem:[#allocation3 + $0x500] sm:$0xff]
    %v255 = vld [vmem:[#allocation3 + $0x508] sm:$0xff]
    %v256 = vld [vmem:[#allocation3 + $0x510] sm:$0xff]
    %v257 = vld [vmem:[#allocation3 + $0x518] sm:$0xff]
    %v258 = vld [vmem:[#allocation3 + $0x520] sm:$0xff]
    %v259 = vld [vmem:[#allocation3 + $0x528] sm:$0xff]
    %v260 = vld [vmem:[#allocation3 + $0x530] sm:$0xff]
    %v261 = vld [vmem:[#allocation3 + $0x538] sm:$0xff]
    %v262 = vld [vmem:[#allocation3 + $0x540] sm:$0xff]
    %v263 = vld [vmem:[#allocation3 + $0x548] sm:$0xff]
    %v264 = vld [vmem:[#allocation3 + $0x550] sm:$0xff]
    %v265 = vld [vmem:[#allocation3 + $0x558] sm:$0xff]
    %v266 = vld [vmem:[#allocation3 + $0x560] sm:$0xff]
    %v267 = vld [vmem:[#allocation3 + $0x568] sm:$0xff]
    %v268 = vld [vmem:[#allocation3 + $0x570] sm:$0xff]
    %v269 = vld [vmem:[#allocation3 + $0x578] sm:$0xff]
    %v270 = vld [vmem:[#allocation3 + $0x580] sm:$0xff]
    %v271 = vld [vmem:[#allocation3 + $0x588] sm:$0xff]
    %v272 = vld [vmem:[#allocation3 + $0x590] sm:$0xff]
    %v273 = vld [vmem:[#allocation3 + $0x598] sm:$0xff]
    %v274 = vld [vmem:[#allocation3 + $0x5a0] sm:$0xff]
    %v275 = vld [vmem:[#allocation3 + $0x5a8] sm:$0xff]
    %v276 = vld [vmem:[#allocation3 + $0x5b0] sm:$0xff]
    %v277 = vld [vmem:[#allocation3 + $0x5b8] sm:$0xff]
    %v278 = vld [vmem:[#allocation3 + $0x5c0] sm:$0xff]
    %v279 = vld [vmem:[#allocation3 + $0x5c8] sm:$0xff]
    %v280 = vld [vmem:[#allocation3 + $0x5d0] sm:$0xff]
    %v281 = vld [vmem:[#allocation3 + $0x5d8] sm:$0xff]
    %v282 = vld [vmem:[#allocation3 + $0x5e0] sm:$0xff]
    %v283 = vld [vmem:[#allocation3 + $0x5e8] sm:$0xff]
    %v284 = vld [vmem:[#allocation3 + $0x5f0] sm:$0xff]
    %v285 = vld [vmem:[#allocation3 + $0x5f8] sm:$0xff]
    %v286 = vld [vmem:[#allocation3 + $0x600] sm:$0xff]
    %v287 = vld [vmem:[#allocation3 + $0x608] sm:$0xff]
    %v288 = vld [vmem:[#allocation3 + $0x610] sm:$0xff]
    %v289 = vld [vmem:[#allocation3 + $0x618] sm:$0xff]
    %v290 = vld [vmem:[#allocation3 + $0x620] sm:$0xff]
    %v291 = vld [vmem:[#allocation3 + $0x628] sm:$0xff]
    %v292 = vld [vmem:[#allocation3 + $0x630] sm:$0xff]
    %v293 = vld [vmem:[#allocation3 + $0x638] sm:$0xff]
    %v294 = vld [vmem:[#allocation3 + $0x640] sm:$0xff]
    %v295 = vld [vmem:[#allocation3 + $0x648] sm:$0xff]
    %v296 = vld [vmem:[#allocation3 + $0x650] sm:$0xff]
    %v297 = vld [vmem:[#allocation3 + $0x658] sm:$0xff]
    %v298 = vld [vmem:[#allocation3 + $0x660] sm:$0xff]
    %v299 = vld [vmem:[#allocation3 + $0x668] sm:$0xff]
    %v300 = vld [vmem:[#allocation3 + $0x670] sm:$0xff]
    %v301 = vld [vmem:[#allocation3 + $0x678] sm:$0xff]
    %v302 = vld [vmem:[#allocation3 + $0x680] sm:$0xff]
    %v303 = vld [vmem:[#allocation3 + $0x688] sm:$0xff]
    %v304 = vld [vmem:[#allocation3 + $0x690] sm:$0xff]
    %v305 = vld [vmem:[#allocation3 + $0x698] sm:$0xff]
    %v306 = vld [vmem:[#allocation3 + $0x6a0] sm:$0xff]
    %v307 = vld [vmem:[#allocation3 + $0x6a8] sm:$0xff]
    %v308 = vld [vmem:[#allocation3 + $0x6b0] sm:$0xff]
    %v309 = vld [vmem:[#allocation3 + $0x6b8] sm:$0xff]
    %v310 = vld [vmem:[#allocation3 + $0x6c0] sm:$0xff]
    %v311 = vld [vmem:[#allocation3 + $0x6c8] sm:$0xff]
    %v312 = vld [vmem:[#allocation3 + $0x6d0] sm:$0xff]
    %v313 = vld [vmem:[#allocation3 + $0x6d8] sm:$0xff]
    %v314 = vld [vmem:[#allocation3 + $0x6e0] sm:$0xff]
    %v315 = vld [vmem:[#allocation3 + $0x6e8] sm:$0xff]
    %v316 = vld [vmem:[#allocation3 + $0x6f0] sm:$0xff]
    %v317 = vld [vmem:[#allocation3 + $0x6f8] sm:$0xff]
    %v318 = vld [vmem:[#allocation3 + $0x700] sm:$0xff]
    %v319 = vld [vmem:[#allocation3 + $0x708] sm:$0xff]
    %v320 = vld [vmem:[#allocation3 + $0x710] sm:$0xff]
    %v321 = vld [vmem:[#allocation3 + $0x718] sm:$0xff]
    %v322 = vld [vmem:[#allocation3 + $0x720] sm:$0xff]
    %v323 = vld [vmem:[#allocation3 + $0x728] sm:$0xff]
    %v324 = vld [vmem:[#allocation3 + $0x730] sm:$0xff]
    %v325 = vld [vmem:[#allocation3 + $0x738] sm:$0xff]
    %v326 = vld [vmem:[#allocation3 + $0x740] sm:$0xff]
    %v327 = vld [vmem:[#allocation3 + $0x748] sm:$0xff]
    %v328 = vld [vmem:[#allocation3 + $0x750] sm:$0xff]
    %v329 = vld [vmem:[#allocation3 + $0x758] sm:$0xff]
    %v330 = vld [vmem:[#allocation3 + $0x760] sm:$0xff]
    %v331 = vld [vmem:[#allocation3 + $0x768] sm:$0xff]
    %v332 = vld [vmem:[#allocation3 + $0x770] sm:$0xff]
    %v333 = vld [vmem:[#allocation3 + $0x778] sm:$0xff]
    %v334 = vld [vmem:[#allocation3 + $0x780] sm:$0xff]
    %v335 = vld [vmem:[#allocation3 + $0x788] sm:$0xff]
    %v336 = vld [vmem:[#allocation3 + $0x790] sm:$0xff]
    %v337 = vld [vmem:[#allocation3 + $0x798] sm:$0xff]
    %v338 = vld [vmem:[#allocation3 + $0x7a0] sm:$0xff]
    %v339 = vld [vmem:[#allocation3 + $0x7a8] sm:$0xff]
    %v340 = vld [vmem:[#allocation3 + $0x7b0] sm:$0xff]
    %v341 = vld [vmem:[#allocation3 + $0x7b8] sm:$0xff]
    %v342 = vld [vmem:[#allocation3 + $0x7c0] sm:$0xff]
    %v343 = vld [vmem:[#allocation3 + $0x7c8] sm:$0xff]
    %v344 = vld [vmem:[#allocation3 + $0x7d0] sm:$0xff]
    %v345 = vld [vmem:[#allocation3 + $0x7d8] sm:$0xff]
    %v346 = vld [vmem:[#allocation3 + $0x7e0] sm:$0xff]
    %v347 = vld [vmem:[#allocation3 + $0x7e8] sm:$0xff]
    %v348 = vld [vmem:[#allocation3 + $0x7f0] sm:$0xff]
    %v349 = vld [vmem:[#allocation3 + $0x7f8] sm:$0xff]
    %v350 = vadd.f32 %v94, %v96
    %v351 = vadd.f32 %v350, %v98
    %v352 = vadd.f32 %v351, %v100
    %v353 = vadd.f32 %v352, %v102
    %v354 = vadd.f32 %v353, %v104
    %v355 = vadd.f32 %v354, %v106
    %v356 = vadd.f32 %v355, %v108
    %v357 = vrot.slane %v356, 4
    %v358 = vadd.f32 %v356, %v357
    %v359 = vrot.slane %v358, 2
    %v360 = vadd.f32 %v358, %v359
    %v361 = vrot.slane %v360, 1
    %v362 = vadd.f32 %v360, %v361
    %v363 = vadd.f32 %v95, %v97
    %v364 = vadd.f32 %v363, %v99
    %v365 = vadd.f32 %v364, %v101
    %v366 = vadd.f32 %v365, %v103
    %v367 = vadd.f32 %v366, %v105
    %v368 = vadd.f32 %v367, %v107
    %v369 = vadd.f32 %v368, %v109
    %v370 = vrot.slane %v369, 4
    %v371 = vadd.f32 %v369, %v370
    %v372 = vrot.slane %v371, 2
    %v373 = vadd.f32 %v371, %v372
    %v374 = vrot.slane %v373, 1
    %v375 = vadd.f32 %v373, %v374
    %v376 = vadd.f32 %v110, %v112
    %v377 = vadd.f32 %v376, %v114
    %v378 = vadd.f32 %v377, %v116
    %v379 = vadd.f32 %v378, %v118
    %v380 = vadd.f32 %v379, %v120
    %v381 = vadd.f32 %v380, %v122
    %v382 = vadd.f32 %v381, %v124
    %v383 = vrot.slane %v382, 4
    %v384 = vadd.f32 %v382, %v383
    %v385 = vrot.slane %v384, 2
    %v386 = vadd.f32 %v384, %v385
    %v387 = vrot.slane %v386, 1
    %v388 = vadd.f32 %v386, %v387
    %v389 = vadd.f32 %v111, %v113
    %v390 = vadd.f32 %v389, %v115
    %v391 = vadd.f32 %v390, %v117
    %v392 = vadd.f32 %v391, %v119
    %v393 = vadd.f32 %v392, %v121
    %v394 = vadd.f32 %v393, %v123
    %v395 = vadd.f32 %v394, %v125
    %v396 = vrot.slane %v395, 4
    %v397 = vadd.f32 %v395, %v396
    %v398 = vrot.slane %v397, 2
    %v399 = vadd.f32 %v397, %v398
    %v400 = vrot.slane %v399, 1
    %v401 = vadd.f32 %v399, %v400
    %v402 = vadd.f32 %v126, %v128
    %v403 = vadd.f32 %v402, %v130
    %v404 = vadd.f32 %v403, %v132
    %v405 = vadd.f32 %v404, %v134
    %v406 = vadd.f32 %v405, %v136
    %v407 = vadd.f32 %v406, %v138
    %v408 = vadd.f32 %v407, %v140
    %v409 = vrot.slane %v408, 4
    %v410 = vadd.f32 %v408, %v409
    %v411 = vrot.slane %v410, 2
    %v412 = vadd.f32 %v410, %v411
    %v413 = vrot.slane %v412, 1
    %v414 = vadd.f32 %v412, %v413
    %v415 = vadd.f32 %v127, %v129
    %v416 = vadd.f32 %v415, %v131
    %v417 = vadd.f32 %v416, %v133
    %v418 = vadd.f32 %v417, %v135
    %v419 = vadd.f32 %v418, %v137
    %v420 = vadd.f32 %v419, %v139
    %v421 = vadd.f32 %v420, %v141
    %v422 = vrot.slane %v421, 4
    %v423 = vadd.f32 %v421, %v422
    %v424 = vrot.slane %v423, 2
    %v425 = vadd.f32 %v423, %v424
    %v426 = vrot.slane %v425, 1
    %v427 = vadd.f32 %v425, %v426
    %v428 = vadd.f32 %v142, %v144
    %v429 = vadd.f32 %v428, %v146
    %v430 = vadd.f32 %v429, %v148
    %v431 = vadd.f32 %v430, %v150
    %v432 = vadd.f32 %v431, %v152
    %v433 = vadd.f32 %v432, %v154
    %v434 = vadd.f32 %v433, %v156
    %v435 = vrot.slane %v434, 4
    %v436 = vadd.f32 %v434, %v435
    %v437 = vrot.slane %v436, 2
    %v438 = vadd.f32 %v436, %v437
    %v439 = vrot.slane %v438, 1
    %v440 = vadd.f32 %v438, %v439
    %v441 = vadd.f32 %v143, %v145
    %v442 = vadd.f32 %v441, %v147
    %v443 = vadd.f32 %v442, %v149
    %v444 = vadd.f32 %v443, %v151
    %v445 = vadd.f32 %v444, %v153
    %v446 = vadd.f32 %v445, %v155
    %v447 = vadd.f32 %v446, %v157
    %v448 = vrot.slane %v447, 4
    %v449 = vadd.f32 %v447, %v448
    %v450 = vrot.slane %v449, 2
    %v451 = vadd.f32 %v449, %v450
    %v452 = vrot.slane %v451, 1
    %v453 = vadd.f32 %v451, %v452
    %v454 = vadd.f32 %v158, %v160
    %v455 = vadd.f32 %v454, %v162
    %v456 = vadd.f32 %v455, %v164
    %v457 = vadd.f32 %v456, %v166
    %v458 = vadd.f32 %v457, %v168
    %v459 = vadd.f32 %v458, %v170
    %v460 = vadd.f32 %v459, %v172
    %v461 = vrot.slane %v460, 4
    %v462 = vadd.f32 %v460, %v461
    %v463 = vrot.slane %v462, 2
    %v464 = vadd.f32 %v462, %v463
    %v465 = vrot.slane %v464, 1
    %v466 = vadd.f32 %v464, %v465
    %v467 = vadd.f32 %v159, %v161
    %v468 = vadd.f32 %v467, %v163
    %v469 = vadd.f32 %v468, %v165
    %v470 = vadd.f32 %v469, %v167
    %v471 = vadd.f32 %v470, %v169
    %v472 = vadd.f32 %v471, %v171
    %v473 = vadd.f32 %v472, %v173
    %v474 = vrot.slane %v473, 4
    %v475 = vadd.f32 %v473, %v474
    %v476 = vrot.slane %v475, 2
    %v477 = vadd.f32 %v475, %v476
    %v478 = vrot.slane %v477, 1
    %v479 = vadd.f32 %v477, %v478
    %v480 = vadd.f32 %v174, %v176
    %v481 = vadd.f32 %v480, %v178
    %v482 = vadd.f32 %v481, %v180
    %v483 = vadd.f32 %v482, %v182
    %v484 = vadd.f32 %v483, %v184
    %v485 = vadd.f32 %v484, %v186
    %v486 = vadd.f32 %v485, %v188
    %v487 = vrot.slane %v486, 4
    %v488 = vadd.f32 %v486, %v487
    %v489 = vrot.slane %v488, 2
    %v490 = vadd.f32 %v488, %v489
    %v491 = vrot.slane %v490, 1
    %v492 = vadd.f32 %v490, %v491
    %v493 = vadd.f32 %v175, %v177
    %v494 = vadd.f32 %v493, %v179
    %v495 = vadd.f32 %v494, %v181
    %v496 = vadd.f32 %v495, %v183
    %v497 = vadd.f32 %v496, %v185
    %v498 = vadd.f32 %v497, %v187
    %v499 = vadd.f32 %v498, %v189
    %v500 = vrot.slane %v499, 4
    %v501 = vadd.f32 %v499, %v500
    %v502 = vrot.slane %v501, 2
    %v503 = vadd.f32 %v501, %v502
    %v504 = vrot.slane %v503, 1
    %v505 = vadd.f32 %v503, %v504
    %v506 = vadd.f32 %v190, %v192
    %v507 = vadd.f32 %v506, %v194
    %v508 = vadd.f32 %v507, %v196
    %v509 = vadd.f32 %v508, %v198
    %v510 = vadd.f32 %v509, %v200
    %v511 = vadd.f32 %v510, %v202
    %v512 = vadd.f32 %v511, %v204
    %v513 = vrot.slane %v512, 4
    %v514 = vadd.f32 %v512, %v513
    %v515 = vrot.slane %v514, 2
    %v516 = vadd.f32 %v514, %v515
    %v517 = vrot.slane %v516, 1
    %v518 = vadd.f32 %v516, %v517
    %v519 = vadd.f32 %v191, %v193
    %v520 = vadd.f32 %v519, %v195
    %v521 = vadd.f32 %v520, %v197
    %v522 = vadd.f32 %v521, %v199
    %v523 = vadd.f32 %v522, %v201
    %v524 = vadd.f32 %v523, %v203
    %v525 = vadd.f32 %v524, %v205
    %v526 = vrot.slane %v525, 4
    %v527 = vadd.f32 %v525, %v526
    %v528 = vrot.slane %v527, 2
    %v529 = vadd.f32 %v527, %v528
    %v530 = vrot.slane %v529, 1
    %v531 = vadd.f32 %v529, %v530
    %v532 = vadd.f32 %v206, %v208
    %v533 = vadd.f32 %v532, %v210
    %v534 = vadd.f32 %v533, %v212
    %v535 = vadd.f32 %v534, %v214
    %v536 = vadd.f32 %v535, %v216
    %v537 = vadd.f32 %v536, %v218
    %v538 = vadd.f32 %v537, %v220
    %v539 = vrot.slane %v538, 4
    %v540 = vadd.f32 %v538, %v539
    %v541 = vrot.slane %v540, 2
    %v542 = vadd.f32 %v540, %v541
    %v543 = vrot.slane %v542, 1
    %v544 = vadd.f32 %v542, %v543
    %v545 = vadd.f32 %v207, %v209
    %v546 = vadd.f32 %v545, %v211
    %v547 = vadd.f32 %v546, %v213
    %v548 = vadd.f32 %v547, %v215
    %v549 = vadd.f32 %v548, %v217
    %v550 = vadd.f32 %v549, %v219
    %v551 = vadd.f32 %v550, %v221
    %v552 = vrot.slane %v551, 4
    %v553 = vadd.f32 %v551, %v552
    %v554 = vrot.slane %v553, 2
    %v555 = vadd.f32 %v553, %v554
    %v556 = vrot.slane %v555, 1
    %v557 = vadd.f32 %v555, %v556
    %v558 = vadd.f32 %v222, %v224
    %v559 = vadd.f32 %v558, %v226
    %v560 = vadd.f32 %v559, %v228
    %v561 = vadd.f32 %v560, %v230
    %v562 = vadd.f32 %v561, %v232
    %v563 = vadd.f32 %v562, %v234
    %v564 = vadd.f32 %v563, %v236
    %v565 = vrot.slane %v564, 4
    %v566 = vadd.f32 %v564, %v565
    %v567 = vrot.slane %v566, 2
    %v568 = vadd.f32 %v566, %v567
    %v569 = vrot.slane %v568, 1
    %v570 = vadd.f32 %v568, %v569
    %v571 = vadd.f32 %v223, %v225
    %v572 = vadd.f32 %v571, %v227
    %v573 = vadd.f32 %v572, %v229
    %v574 = vadd.f32 %v573, %v231
    %v575 = vadd.f32 %v574, %v233
    %v576 = vadd.f32 %v575, %v235
    %v577 = vadd.f32 %v576, %v237
    %v578 = vrot.slane %v577, 4
    %v579 = vadd.f32 %v577, %v578
    %v580 = vrot.slane %v579, 2
    %v581 = vadd.f32 %v579, %v580
    %v582 = vrot.slane %v581, 1
    %v583 = vadd.f32 %v581, %v582
    %v584 = vadd.f32 %v238, %v240
    %v585 = vadd.f32 %v584, %v242
    %v586 = vadd.f32 %v585, %v244
    %v587 = vadd.f32 %v586, %v246
    %v588 = vadd.f32 %v587, %v248
    %v589 = vadd.f32 %v588, %v250
    %v590 = vadd.f32 %v589, %v252
    %v591 = vrot.slane %v590, 4
    %v592 = vadd.f32 %v590, %v591
    %v593 = vrot.slane %v592, 2
    %v594 = vadd.f32 %v592, %v593
    %v595 = vrot.slane %v594, 1
    %v596 = vadd.f32 %v594, %v595
    %v597 = vadd.f32 %v239, %v241
    %v598 = vadd.f32 %v597, %v243
    %v599 = vadd.f32 %v598, %v245
    %v600 = vadd.f32 %v599, %v247
    %v601 = vadd.f32 %v600, %v249
    %v602 = vadd.f32 %v601, %v251
    %v603 = vadd.f32 %v602, %v253
    %v604 = vrot.slane %v603, 4
    %v605 = vadd.f32 %v603, %v604
    %v606 = vrot.slane %v605, 2
    %v607 = vadd.f32 %v605, %v606
    %v608 = vrot.slane %v607, 1
    %v609 = vadd.f32 %v607, %v608
    %v610 = vadd.f32 %v254, %v256
    %v611 = vadd.f32 %v610, %v258
    %v612 = vadd.f32 %v611, %v260
    %v613 = vadd.f32 %v612, %v262
    %v614 = vadd.f32 %v613, %v264
    %v615 = vadd.f32 %v614, %v266
    %v616 = vadd.f32 %v615, %v268
    %v617 = vrot.slane %v616, 4
    %v618 = vadd.f32 %v616, %v617
    %v619 = vrot.slane %v618, 2
    %v620 = vadd.f32 %v618, %v619
    %v621 = vrot.slane %v620, 1
    %v622 = vadd.f32 %v620, %v621
    %v623 = vadd.f32 %v255, %v257
    %v624 = vadd.f32 %v623, %v259
    %v625 = vadd.f32 %v624, %v261
    %v626 = vadd.f32 %v625, %v263
    %v627 = vadd.f32 %v626, %v265
    %v628 = vadd.f32 %v627, %v267
    %v629 = vadd.f32 %v628, %v269
    %v630 = vrot.slane %v629, 4
    %v631 = vadd.f32 %v629, %v630
    %v632 = vrot.slane %v631, 2
    %v633 = vadd.f32 %v631, %v632
    %v634 = vrot.slane %v633, 1
    %v635 = vadd.f32 %v633, %v634
    %v636 = vadd.f32 %v270, %v272
    %v637 = vadd.f32 %v636, %v274
    %v638 = vadd.f32 %v637, %v276
    %v639 = vadd.f32 %v638, %v278
    %v640 = vadd.f32 %v639, %v280
    %v641 = vadd.f32 %v640, %v282
    %v642 = vadd.f32 %v641, %v284
    %v643 = vrot.slane %v642, 4
    %v644 = vadd.f32 %v642, %v643
    %v645 = vrot.slane %v644, 2
    %v646 = vadd.f32 %v644, %v645
    %v647 = vrot.slane %v646, 1
    %v648 = vadd.f32 %v646, %v647
    %v649 = vadd.f32 %v271, %v273
    %v650 = vadd.f32 %v649, %v275
    %v651 = vadd.f32 %v650, %v277
    %v652 = vadd.f32 %v651, %v279
    %v653 = vadd.f32 %v652, %v281
    %v654 = vadd.f32 %v653, %v283
    %v655 = vadd.f32 %v654, %v285
    %v656 = vrot.slane %v655, 4
    %v657 = vadd.f32 %v655, %v656
    %v658 = vrot.slane %v657, 2
    %v659 = vadd.f32 %v657, %v658
    %v660 = vrot.slane %v659, 1
    %v661 = vadd.f32 %v659, %v660
    %v662 = vadd.f32 %v286, %v288
    %v663 = vadd.f32 %v662, %v290
    %v664 = vadd.f32 %v663, %v292
    %v665 = vadd.f32 %v664, %v294
    %v666 = vadd.f32 %v665, %v296
    %v667 = vadd.f32 %v666, %v298
    %v668 = vadd.f32 %v667, %v300
    %v669 = vrot.slane %v668, 4
    %v670 = vadd.f32 %v668, %v669
    %v671 = vrot.slane %v670, 2
    %v672 = vadd.f32 %v670, %v671
    %v673 = vrot.slane %v672, 1
    %v674 = vadd.f32 %v672, %v673
    %v675 = vadd.f32 %v287, %v289
    %v676 = vadd.f32 %v675, %v291
    %v677 = vadd.f32 %v676, %v293
    %v678 = vadd.f32 %v677, %v295
    %v679 = vadd.f32 %v678, %v297
    %v680 = vadd.f32 %v679, %v299
    %v681 = vadd.f32 %v680, %v301
    %v682 = vrot.slane %v681, 4
    %v683 = vadd.f32 %v681, %v682
    %v684 = vrot.slane %v683, 2
    %v685 = vadd.f32 %v683, %v684
    %v686 = vrot.slane %v685, 1
    %v687 = vadd.f32 %v685, %v686
    %v688 = vadd.f32 %v302, %v304
    %v689 = vadd.f32 %v688, %v306
    %v690 = vadd.f32 %v689, %v308
    %v691 = vadd.f32 %v690, %v310
    %v692 = vadd.f32 %v691, %v312
    %v693 = vadd.f32 %v692, %v314
    %v694 = vadd.f32 %v693, %v316
    %v695 = vrot.slane %v694, 4
    %v696 = vadd.f32 %v694, %v695
    %v697 = vrot.slane %v696, 2
    %v698 = vadd.f32 %v696, %v697
    %v699 = vrot.slane %v698, 1
    %v700 = vadd.f32 %v698, %v699
    %v701 = vadd.f32 %v303, %v305
    %v702 = vadd.f32 %v701, %v307
    %v703 = vadd.f32 %v702, %v309
    %v704 = vadd.f32 %v703, %v311
    %v705 = vadd.f32 %v704, %v313
    %v706 = vadd.f32 %v705, %v315
    %v707 = vadd.f32 %v706, %v317
    %v708 = vrot.slane %v707, 4
    %v709 = vadd.f32 %v707, %v708
    %v710 = vrot.slane %v709, 2
    %v711 = vadd.f32 %v709, %v710
    %v712 = vrot.slane %v711, 1
    %v713 = vadd.f32 %v711, %v712
    %v714 = vadd.f32 %v318, %v320
    %v715 = vadd.f32 %v714, %v322
    %v716 = vadd.f32 %v715, %v324
    %v717 = vadd.f32 %v716, %v326
    %v718 = vadd.f32 %v717, %v328
    %v719 = vadd.f32 %v718, %v330
    %v720 = vadd.f32 %v719, %v332
    %v721 = vrot.slane %v720, 4
    %v722 = vadd.f32 %v720, %v721
    %v723 = vrot.slane %v722, 2
    %v724 = vadd.f32 %v722, %v723
    %v725 = vrot.slane %v724, 1
    %v726 = vadd.f32 %v724, %v725
    %v727 = vadd.f32 %v319, %v321
    %v728 = vadd.f32 %v727, %v323
    %v729 = vadd.f32 %v728, %v325
    %v730 = vadd.f32 %v729, %v327
    %v731 = vadd.f32 %v730, %v329
    %v732 = vadd.f32 %v731, %v331
    %v733 = vadd.f32 %v732, %v333
    %v734 = vrot.slane %v733, 4
    %v735 = vadd.f32 %v733, %v734
    %v736 = vrot.slane %v735, 2
    %v737 = vadd.f32 %v735, %v736
    %v738 = vrot.slane %v737, 1
    %v739 = vadd.f32 %v737, %v738
    %v740 = vadd.f32 %v334, %v336
    %v741 = vadd.f32 %v740, %v338
    %v742 = vadd.f32 %v741, %v340
    %v743 = vadd.f32 %v742, %v342
    %v744 = vadd.f32 %v743, %v344
    %v745 = vadd.f32 %v744, %v346
    %v746 = vadd.f32 %v745, %v348
    %v747 = vrot.slane %v746, 4
    %v748 = vadd.f32 %v746, %v747
    %v749 = vrot.slane %v748, 2
    %v750 = vadd.f32 %v748, %v749
    %v751 = vrot.slane %v750, 1
    %v752 = vadd.f32 %v750, %v751
    %v753 = vadd.f32 %v335, %v337
    %v754 = vadd.f32 %v753, %v339
    %v755 = vadd.f32 %v754, %v341
    %v756 = vadd.f32 %v755, %v343
    %v757 = vadd.f32 %v756, %v345
    %v758 = vadd.f32 %v757, %v347
    %v759 = vadd.f32 %v758, %v349
    %v760 = vrot.slane %v759, 4
    %v761 = vadd.f32 %v759, %v760
    %v762 = vrot.slane %v761, 2
    %v763 = vadd.f32 %v761, %v762
    %v764 = vrot.slane %v763, 1
    %v765 = vadd.f32 %v763, %v764
    %vm798 = vcmask 1041409
    %v799 = vsel %vm798, %v388, %v362
    %vm800 = vcmask 1042434
    %v801 = vsel %vm800, %v414, %v799
    %vm802 = vcmask 1043459
    %v803 = vsel %vm802, %v440, %v801
    %vm804 = vcmask 1044484
    %v805 = vsel %vm804, %v466, %v803
    %vm806 = vcmask 1045509
    %v807 = vsel %vm806, %v492, %v805
    %vm808 = vcmask 1046534
    %v809 = vsel %vm808, %v518, %v807
    %vm810 = vcmask 1047559
    %v811 = vsel %vm810, %v544, %v809
    %v812 = vsel %vm798, %v401, %v375
    %v813 = vsel %vm800, %v427, %v812
    %v814 = vsel %vm802, %v453, %v813
    %v815 = vsel %vm804, %v479, %v814
    %v816 = vsel %vm806, %v505, %v815
    %v817 = vsel %vm808, %v531, %v816
    %v818 = vsel %vm810, %v557, %v817
    %v819 = vsel %vm798, %v596, %v570
    %v820 = vsel %vm800, %v622, %v819
    %v821 = vsel %vm802, %v648, %v820
    %v822 = vsel %vm804, %v674, %v821
    %v823 = vsel %vm806, %v700, %v822
    %v824 = vsel %vm808, %v726, %v823
    %v825 = vsel %vm810, %v752, %v824
    %v826 = vsel %vm798, %v609, %v583
    %v827 = vsel %vm800, %v635, %v826
    %v828 = vsel %vm802, %v661, %v827
    %v829 = vsel %vm804, %v687, %v828
    %v830 = vsel %vm806, %v713, %v829
    %v831 = vsel %vm808, %v739, %v830
    %v832 = vsel %vm810, %v765, %v831
    %v837 = vadd.f32 %v90, %v811
    %v838 = vadd.f32 %v91, %v818
    %v839 = vadd.f32 %v92, %v825
    %v840 = vadd.f32 %v93, %v832
    %841 = vst [vmem:[#allocation2] sm:$0xff] %v837
    %842 = vst [vmem:[#allocation2 + $0x8] sm:$0xff] %v838
    %843 = vst [vmem:[#allocation2 + $0x10] sm:$0xff] %v839
    %844 = vst [vmem:[#allocation2 + $0x18] sm:$0xff] %v840
    // Predicated region
    $region42: #{tpu_custom_call.1} parent=1 // pred_check
      %p845 = pneg %p82
    $region43: #{tpu_custom_call.1} parent=1 // pred_check_branch
      %847 = sbr.rel (%p845) target = $region45
    $region44: #{tpu_custom_call.1} parent=1 // pred_region
      %v848 = vld [vmem:[#allocation2] sm:$0xff]
      %v849 = vld [vmem:[#allocation2 + $0x8] sm:$0xff]
      %v850 = vld [vmem:[#allocation2 + $0x10] sm:$0xff]
      %v851 = vld [vmem:[#allocation2 + $0x18] sm:$0xff]
      %v852 = vmul.f32 %v848, 0.015625
      %v853 = vmul.f32 %v849, 0.015625
      %v854 = vmul.f32 %v850, 0.015625
      %v855 = vmul.f32 %v851, 0.015625
      %v856 = vpack.c.bf16 %v854, %v852
      %v857 = vpack.c.bf16 %v855, %v853
      %v858 = vld [vmem:[#allocation6] sm:$0xff]
      %v859 = vld [vmem:[#allocation6 + $0x8] sm:$0xff]
      %v860 = vld [vmem:[#allocation6 + $0x10] sm:$0xff]
      %v861 = vld [vmem:[#allocation6 + $0x18] sm:$0xff]
      %v862 = vld [vmem:[#allocation6 + $0x20] sm:$0xff]
      %v863 = vld [vmem:[#allocation6 + $0x28] sm:$0xff]
      %v864 = vld [vmem:[#allocation6 + $0x30] sm:$0xff]
      %v865 = vld [vmem:[#allocation6 + $0x38] sm:$0xff]
      %v866 = vld [vmem:[#allocation6 + $0x40] sm:$0xff]
      %v867 = vld [vmem:[#allocation6 + $0x48] sm:$0xff]
      %v868 = vld [vmem:[#allocation6 + $0x50] sm:$0xff]
      %v869 = vld [vmem:[#allocation6 + $0x58] sm:$0xff]
      %v870 = vld [vmem:[#allocation6 + $0x60] sm:$0xff]
      %v871 = vld [vmem:[#allocation6 + $0x68] sm:$0xff]
      %v872 = vld [vmem:[#allocation6 + $0x70] sm:$0xff]
      %v873 = vld [vmem:[#allocation6 + $0x78] sm:$0xff]
      %v874 = vld [vmem:[#allocation6 + $0x80] sm:$0xff]
      %v875 = vld [vmem:[#allocation6 + $0x88] sm:$0xff]
      %v876 = vld [vmem:[#allocation6 + $0x90] sm:$0xff]
      %v877 = vld [vmem:[#allocation6 + $0x98] sm:$0xff]
      %v878 = vld [vmem:[#allocation6 + $0xa0] sm:$0xff]
      %v879 = vld [vmem:[#allocation6 + $0xa8] sm:$0xff]
      %v880 = vld [vmem:[#allocation6 + $0xb0] sm:$0xff]
      %v881 = vld [vmem:[#allocation6 + $0xb8] sm:$0xff]
      %v882 = vld [vmem:[#allocation6 + $0xc0] sm:$0xff]
      %v883 = vld [vmem:[#allocation6 + $0xc8] sm:$0xff]
      %v884 = vld [vmem:[#allocation6 + $0xd0] sm:$0xff]
      %v885 = vld [vmem:[#allocation6 + $0xd8] sm:$0xff]
      %v886 = vld [vmem:[#allocation6 + $0xe0] sm:$0xff]
      %v887 = vld [vmem:[#allocation6 + $0xe8] sm:$0xff]
      %v888 = vld [vmem:[#allocation6 + $0xf0] sm:$0xff]
      %v889 = vld [vmem:[#allocation6 + $0xf8] sm:$0xff]
      %v890 = vld [vmem:[#allocation8] sm:$0x3]
      %v892 = vperm.slane %v890, 0
      %v893 = vperm.slane %v890, 1
      %v928 = vunpack.c.l.b16 %v858
      %v929 = vunpack.c.h.b16 %v858
      %v930 = vunpack.c.l.b16 %v859
      %v931 = vunpack.c.h.b16 %v859
      %v932 = vunpack.c.l.b16 %v860
      %v933 = vunpack.c.h.b16 %v860
      %v934 = vunpack.c.l.b16 %v861
      %v935 = vunpack.c.h.b16 %v861
      %v936 = vunpack.c.l.b16 %v862
      %v937 = vunpack.c.h.b16 %v862
      %v938 = vunpack.c.l.b16 %v863
      %v939 = vunpack.c.h.b16 %v863
      %v940 = vunpack.c.l.b16 %v864
      %v941 = vunpack.c.h.b16 %v864
      %v942 = vunpack.c.l.b16 %v865
      %v943 = vunpack.c.h.b16 %v865
      %v944 = vunpack.c.l.b16 %v866
      %v945 = vunpack.c.h.b16 %v866
      %v946 = vunpack.c.l.b16 %v867
      %v947 = vunpack.c.h.b16 %v867
      %v948 = vunpack.c.l.b16 %v868
      %v949 = vunpack.c.h.b16 %v868
      %v950 = vunpack.c.l.b16 %v869
      %v951 = vunpack.c.h.b16 %v869
      %v952 = vunpack.c.l.b16 %v870
      %v953 = vunpack.c.h.b16 %v870
      %v954 = vunpack.c.l.b16 %v871
      %v955 = vunpack.c.h.b16 %v871
      %v956 = vunpack.c.l.b16 %v872
      %v957 = vunpack.c.h.b16 %v872
      %v958 = vunpack.c.l.b16 %v873
      %v959 = vunpack.c.h.b16 %v873
      %v960 = vunpack.c.l.b16 %v874
      %v961 = vunpack.c.h.b16 %v874
      %v962 = vunpack.c.l.b16 %v875
      %v963 = vunpack.c.h.b16 %v875
      %v964 = vunpack.c.l.b16 %v876
      %v965 = vunpack.c.h.b16 %v876
      %v966 = vunpack.c.l.b16 %v877
      %v967 = vunpack.c.h.b16 %v877
      %v968 = vunpack.c.l.b16 %v878
      %v969 = vunpack.c.h.b16 %v878
      %v970 = vunpack.c.l.b16 %v879
      %v971 = vunpack.c.h.b16 %v879
      %v972 = vunpack.c.l.b16 %v880
      %v973 = vunpack.c.h.b16 %v880
      %v974 = vunpack.c.l.b16 %v881
      %v975 = vunpack.c.h.b16 %v881
      %v976 = vunpack.c.l.b16 %v882
      %v977 = vunpack.c.h.b16 %v882
      %v978 = vunpack.c.l.b16 %v883
      %v979 = vunpack.c.h.b16 %v883
      %v980 = vunpack.c.l.b16 %v884
      %v981 = vunpack.c.h.b16 %v884
      %v982 = vunpack.c.l.b16 %v885
      %v983 = vunpack.c.h.b16 %v885
      %v984 = vunpack.c.l.b16 %v886
      %v985 = vunpack.c.h.b16 %v886
      %v986 = vunpack.c.l.b16 %v887
      %v987 = vunpack.c.h.b16 %v887
      %v988 = vunpack.c.l.b16 %v888
      %v989 = vunpack.c.h.b16 %v888
      %v990 = vunpack.c.l.b16 %v889
      %v991 = vunpack.c.h.b16 %v889
      %v992 = vpack.c.b16 %v930, %v928
      %v993 = vpack.c.b16 %v931, %v929
      %v994 = vpack.c.b16 %v934, %v932
      %v995 = vpack.c.b16 %v935, %v933
      %v996 = vpack.c.b16 %v938, %v936
      %v997 = vpack.c.b16 %v939, %v937
      %v998 = vpack.c.b16 %v942, %v940
      %v999 = vpack.c.b16 %v943, %v941
      %v1000 = vpack.c.b16 %v946, %v944
      %v1001 = vpack.c.b16 %v947, %v945
      %v1002 = vpack.c.b16 %v950, %v948
      %v1003 = vpack.c.b16 %v951, %v949
      %v1004 = vpack.c.b16 %v954, %v952
      %v1005 = vpack.c.b16 %v955, %v953
      %v1006 = vpack.c.b16 %v958, %v956
      %v1007 = vpack.c.b16 %v959, %v957
      %v1008 = vpack.c.b16 %v962, %v960
      %v1009 = vpack.c.b16 %v963, %v961
      %v1010 = vpack.c.b16 %v966, %v964
      %v1011 = vpack.c.b16 %v967, %v965
      %v1012 = vpack.c.b16 %v970, %v968
      %v1013 = vpack.c.b16 %v971, %v969
      %v1014 = vpack.c.b16 %v974, %v972
      %v1015 = vpack.c.b16 %v975, %v973
      %v1016 = vpack.c.b16 %v978, %v976
      %v1017 = vpack.c.b16 %v979, %v977
      %v1018 = vpack.c.b16 %v982, %v980
      %v1019 = vpack.c.b16 %v983, %v981
      %v1020 = vpack.c.b16 %v986, %v984
      %v1021 = vpack.c.b16 %v987, %v985
      %v1022 = vpack.c.b16 %v990, %v988
      %v1023 = vpack.c.b16 %v991, %v989
      %1056 = vmatpush.bf16.msra.mxu0 %v1006
      %1057 = vmatpush.bf16.msra.mxu0 %v1004
      %1058 = vmatpush.bf16.msra.mxu0 %v1002
      %1059 = vmatpush.bf16.msra.mxu0 %v1000
      %1060 = vmatpush.bf16.msra.mxu0 %v998
      %1061 = vmatpush.bf16.msra.mxu0 %v996
      %1062 = vmatpush.bf16.msra.mxu0 %v994
      %1063 = vmatpush.bf16.msra.mxu0 %v992
      %1064 = vmatmul.bf16.gmra.mxu0 %v856
      %v1065 = vpop.f32.mrf.mxu0
      %v1066 = vadd.f32 %v892, %v1065
      %v1067 = vpop.f32.mrf.mxu0
      %v1068 = vadd.f32 %v892, %v1067
      %1069 = vdwg.mxu0
      %1070 = vmatpush.bf16.msra.mxu0 %v1022
      %1071 = vmatpush.bf16.msra.mxu0 %v1020
      %1072 = vmatpush.bf16.msra.mxu0 %v1018
      %1073 = vmatpush.bf16.msra.mxu0 %v1016
      %1074 = vmatpush.bf16.msra.mxu0 %v1014
      %1075 = vmatpush.bf16.msra.mxu0 %v1012
      %1076 = vmatpush.bf16.msra.mxu0 %v1010
      %1077 = vmatpush.bf16.msra.mxu0 %v1008
      %1078 = vmatmul.bf16.gmra.mxu0 %v857
      %v1079 = vpop.f32.mrf.mxu0
      %v1080 = vadd.f32 %v1066, %v1079
      %v1081 = vpop.f32.mrf.mxu0
      %v1082 = vadd.f32 %v1068, %v1081
      %1083 = vdwg.mxu0
      %1084 = vmatpush.bf16.msra.mxu0 %v1007
      %1085 = vmatpush.bf16.msra.mxu0 %v1005
      %1086 = vmatpush.bf16.msra.mxu0 %v1003
      %1087 = vmatpush.bf16.msra.mxu0 %v1001
      %1088 = vmatpush.bf16.msra.mxu0 %v999
      %1089 = vmatpush.bf16.msra.mxu0 %v997
      %1090 = vmatpush.bf16.msra.mxu0 %v995
      %1091 = vmatpush.bf16.msra.mxu0 %v993
      %1092 = vmatmul.bf16.gmra.mxu0 %v856
      %v1093 = vpop.f32.mrf.mxu0
      %v1094 = vadd.f32 %v893, %v1093
      %v1095 = vpop.f32.mrf.mxu0
      %v1096 = vadd.f32 %v893, %v1095
      %1097 = vdwg.mxu0
      %1098 = vmatpush.bf16.msra.mxu0 %v1023
      %1099 = vmatpush.bf16.msra.mxu0 %v1021
      %1100 = vmatpush.bf16.msra.mxu0 %v1019
      %1101 = vmatpush.bf16.msra.mxu0 %v1017
      %1102 = vmatpush.bf16.msra.mxu0 %v1015
      %1103 = vmatpush.bf16.msra.mxu0 %v1013
      %1104 = vmatpush.bf16.msra.mxu0 %v1011
      %1105 = vmatpush.bf16.msra.mxu0 %v1009
      %1106 = vmatmul.bf16.gmra.mxu0 %v857
      %v1107 = vpop.f32.mrf.mxu0
      %v1108 = vadd.f32 %v1094, %v1107
      %v1109 = vpop.f32.mrf.mxu0
      %v1110 = vadd.f32 %v1096, %v1109
      %1111 = vdwg.mxu0
      %v1112 = vmax.f32 %v1080, 0.0
      %v1113 = vmax.f32 %v1108, 0.0
      %v1114 = vmax.f32 %v1082, 0.0
      %v1115 = vmax.f32 %v1110, 0.0
      %v1116 = vpack.c.bf16 %v1114, %v1112
      %v1117 = vpack.c.bf16 %v1115, %v1113
      %v1118 = vld [vmem:[#allocation9] sm:$0xf]
      %v1119 = vld [vmem:[#allocation9 + $0x4] sm:$0xf]
      %v1120 = vld [vmem:[#allocation9 + $0x8] sm:$0xf]
      %v1121 = vld [vmem:[#allocation9 + $0xc] sm:$0xf]
      %v1122 = vld [vmem:[#allocation9 + $0x10] sm:$0xf]
      %v1123 = vld [vmem:[#allocation9 + $0x14] sm:$0xf]
      %v1124 = vld [vmem:[#allocation9 + $0x18] sm:$0xf]
      %v1125 = vld [vmem:[#allocation9 + $0x1c] sm:$0xf]
      %v1126 = vld [vmem:[#allocation9 + $0x20] sm:$0xf]
      %v1127 = vld [vmem:[#allocation9 + $0x24] sm:$0xf]
      %v1128 = vld [vmem:[#allocation9 + $0x28] sm:$0xf]
      %v1129 = vld [vmem:[#allocation9 + $0x2c] sm:$0xf]
      %v1130 = vld [vmem:[#allocation9 + $0x30] sm:$0xf]
      %v1131 = vld [vmem:[#allocation9 + $0x34] sm:$0xf]
      %v1132 = vld [vmem:[#allocation9 + $0x38] sm:$0xf]
      %v1133 = vld [vmem:[#allocation9 + $0x3c] sm:$0xf]
      %v1134 = vld [vmem:[#allocation9 + $0x40] sm:$0xf]
      %v1135 = vld [vmem:[#allocation9 + $0x44] sm:$0xf]
      %v1136 = vld [vmem:[#allocation9 + $0x48] sm:$0xf]
      %v1137 = vld [vmem:[#allocation9 + $0x4c] sm:$0xf]
      %v1138 = vld [vmem:[#allocation9 + $0x50] sm:$0xf]
      %v1139 = vld [vmem:[#allocation9 + $0x54] sm:$0xf]
      %v1140 = vld [vmem:[#allocation9 + $0x58] sm:$0xf]
      %v1141 = vld [vmem:[#allocation9 + $0x5c] sm:$0xf]
      %v1142 = vld [vmem:[#allocation9 + $0x60] sm:$0xf]
      %v1143 = vld [vmem:[#allocation9 + $0x64] sm:$0xf]
      %v1144 = vld [vmem:[#allocation9 + $0x68] sm:$0xf]
      %v1145 = vld [vmem:[#allocation9 + $0x6c] sm:$0xf]
      %v1146 = vld [vmem:[#allocation9 + $0x70] sm:$0xf]
      %v1147 = vld [vmem:[#allocation9 + $0x74] sm:$0xf]
      %v1148 = vld [vmem:[#allocation9 + $0x78] sm:$0xf]
      %v1149 = vld [vmem:[#allocation9 + $0x7c] sm:$0xf]
      %v1150 = vld [vmem:[%s4] sm:$0x1]
      %v1152 = vperm.slane %v1150, 0
      %v1186 = vunpack.c.l.b16 %v1118
      %v1187 = vunpack.c.l.b16 %v1119
      %v1188 = vunpack.c.l.b16 %v1120
      %v1189 = vunpack.c.l.b16 %v1121
      %v1190 = vunpack.c.l.b16 %v1122
      %v1191 = vunpack.c.l.b16 %v1123
      %v1192 = vunpack.c.l.b16 %v1124
      %v1193 = vunpack.c.l.b16 %v1125
      %v1194 = vunpack.c.l.b16 %v1126
      %v1195 = vunpack.c.l.b16 %v1127
      %v1196 = vunpack.c.l.b16 %v1128
      %v1197 = vunpack.c.l.b16 %v1129
      %v1198 = vunpack.c.l.b16 %v1130
      %v1199 = vunpack.c.l.b16 %v1131
      %v1200 = vunpack.c.l.b16 %v1132
      %v1201 = vunpack.c.l.b16 %v1133
      %v1202 = vunpack.c.l.b16 %v1134
      %v1203 = vunpack.c.l.b16 %v1135
      %v1204 = vunpack.c.l.b16 %v1136
      %v1205 = vunpack.c.l.b16 %v1137
      %v1206 = vunpack.c.l.b16 %v1138
      %v1207 = vunpack.c.l.b16 %v1139
      %v1208 = vunpack.c.l.b16 %v1140
      %v1209 = vunpack.c.l.b16 %v1141
      %v1210 = vunpack.c.l.b16 %v1142
      %v1211 = vunpack.c.l.b16 %v1143
      %v1212 = vunpack.c.l.b16 %v1144
      %v1213 = vunpack.c.l.b16 %v1145
      %v1214 = vunpack.c.l.b16 %v1146
      %v1215 = vunpack.c.l.b16 %v1147
      %v1216 = vunpack.c.l.b16 %v1148
      %v1217 = vunpack.c.l.b16 %v1149
      %v1218 = vpack.c.b16 %v1187, %v1186
      %v1219 = vpack.c.b16 %v1189, %v1188
      %v1220 = vpack.c.b16 %v1191, %v1190
      %v1221 = vpack.c.b16 %v1193, %v1192
      %v1222 = vpack.c.b16 %v1195, %v1194
      %v1223 = vpack.c.b16 %v1197, %v1196
      %v1224 = vpack.c.b16 %v1199, %v1198
      %v1225 = vpack.c.b16 %v1201, %v1200
      %v1226 = vpack.c.b16 %v1203, %v1202
      %v1227 = vpack.c.b16 %v1205, %v1204
      %v1228 = vpack.c.b16 %v1207, %v1206
      %v1229 = vpack.c.b16 %v1209, %v1208
      %v1230 = vpack.c.b16 %v1211, %v1210
      %v1231 = vpack.c.b16 %v1213, %v1212
      %v1232 = vpack.c.b16 %v1215, %v1214
      %v1233 = vpack.c.b16 %v1217, %v1216
      %1250 = vmatpush.bf16.msra.mxu0 %v1225
      %1251 = vmatpush.bf16.msra.mxu0 %v1224
      %1252 = vmatpush.bf16.msra.mxu0 %v1223
      %1253 = vmatpush.bf16.msra.mxu0 %v1222
      %1254 = vmatpush.bf16.msra.mxu0 %v1221
      %1255 = vmatpush.bf16.msra.mxu0 %v1220
      %1256 = vmatpush.bf16.msra.mxu0 %v1219
      %1257 = vmatpush.bf16.msra.mxu0 %v1218
      %1258 = vmatmul.bf16.gmra.mxu0 %v1116
      %v1259 = vpop.f32.mrf.mxu0
      %v1260 = vadd.f32 %v1152, %v1259
      %v1261 = vpop.f32.mrf.mxu0
      %v1262 = vadd.f32 %v1152, %v1261
      %1263 = vdwg.mxu0
      %1264 = vmatpush.bf16.msra.mxu0 %v1233
      %1265 = vmatpush.bf16.msra.mxu0 %v1232
      %1266 = vmatpush.bf16.msra.mxu0 %v1231
      %1267 = vmatpush.bf16.msra.mxu0 %v1230
      %1268 = vmatpush.bf16.msra.mxu0 %v1229
      %1269 = vmatpush.bf16.msra.mxu0 %v1228
      %1270 = vmatpush.bf16.msra.mxu0 %v1227
      %1271 = vmatpush.bf16.msra.mxu0 %v1226
      %1272 = vmatmul.bf16.gmra.mxu0 %v1117
      %v1273 = vpop.f32.mrf.mxu0
      %v1274 = vadd.f32 %v1260, %v1273
      %v1275 = vpop.f32.mrf.mxu0
      %v1276 = vadd.f32 %v1262, %v1275
      %1277 = vdwg.mxu0
      %v1278 = vmul.f32 %v1274, %v1274
      %v1279 = vmul.f32 %v1276, %v1276
      %1280 = vadd.xlane.f32.xlu0 %v1278
      %v1281 = vpop.xlane.xlu0 %1280
      %1282 = vadd.xlane.f32.xlu0 %v1279
      %v1283 = vpop.xlane.xlu0 %1282
      %v1284 = vmax.f32 %v1281, 1e-24
      %v1285 = vmax.f32 %v1283, 1e-24
      %v1286 = vrsqrt.pop %v1284
      %v1287 = vmul.f32 %v1286, %v1284
      %v1288 = vmul.f32 %v1287, %v1286
      %v1289 = vmul.f32 0.5, %v1288
      %v1290 = vsub.f32 1.5, %v1289
      %v1291 = vmul.f32 %v1286, %v1290
      %vm1292 = vweird.f32 %v1284
      %vm1293 = vweird.f32 %v1286
      %vm1294 = vmor %vm1292, %vm1293
      %v1295 = vsel %vm1294, %v1286, %v1291
      %v1296 = vrsqrt.pop %v1285
      %v1297 = vmul.f32 %v1296, %v1285
      %v1298 = vmul.f32 %v1297, %v1296
      %v1299 = vmul.f32 0.5, %v1298
      %v1300 = vsub.f32 1.5, %v1299
      %v1301 = vmul.f32 %v1296, %v1300
      %vm1302 = vweird.f32 %v1285
      %vm1303 = vweird.f32 %v1296
      %vm1304 = vmor %vm1302, %vm1303
      %v1305 = vsel %vm1304, %v1296, %v1301
      %v1306 = vmul.f32 %v1274, %v1295
      %v1307 = vmul.f32 %v1276, %v1305
      %1308 = vst [vmem:[#allocation11] sm:$0xff] %v1306
      %1309 = vst [vmem:[#allocation11 + $0x8] sm:$0xff] %v1307
    $region45: #{tpu_custom_call.1} parent=1 // pred_fallthru
      _
    // Predicated region
    $region46: #{tpu_custom_call.1} parent=1 // pred_check
      _
    $region47: #{tpu_custom_call.1} parent=1 // pred_check_branch
      %1311 = sbr.rel (0) target = $region49
    $region48: #{tpu_custom_call.1} parent=1 // pred_region
      %1313 = vsyncadd [#allocation5], 0
      %s1314 = sshll.u32 [#allocation11], 4
      %s1315 = int_to_ptr.vmem [resolvable:$true] %s1314
      %s1316 = sshll.u32 %s5, 4
      %s1317 = int_to_ptr.hbm [resolvable:$true] %s1316
      %1322 = dma.vmem_to_hbm [thread:$0]  %s1315, 256, %s1317, [#allocation5], 128, 128, 8
    $region49: #{tpu_custom_call.1} parent=1 // pred_fallthru
      _
    // Predicated region
    $region50: #{tpu_custom_call.1} parent=1 // pred_check
      _
    $region51: #{tpu_custom_call.1} parent=1 // pred_check_branch
      %1324 = sbr.rel (0) target = $region53
    $region52: #{tpu_custom_call.1} parent=1 // pred_region
      %1326 = dma.done [#allocation5], 256
    $region53: #{tpu_custom_call.1} parent=1 // pred_fallthru
      _
    %1327 = vsyncpa [#allocation4], 1
    %1328 = vsyncpa [#allocation7], 1
    %1329 = vsyncpa [#allocation10], 1
    %1330 = vsyncpa [#allocation5], 1

</llo_original>
